<compile_context>
chip_gen: v7x
topology: tpu7x:2x2x1
jax: 0.10.0
libtpu: 0.0.40
codegen_flags: <defaults>
</compile_context>

<pallas_src>
import math

import jax
import jax.numpy as jnp
from jax.experimental import pallas as pl
from jax.experimental.pallas import tpu as pltpu


def linear_model_kernel(x_ref, z_ref, wcat_ref, bcat_ref, out_ref):
    x_dim = x_ref.shape[1]

    # Upcast (no-op for f32 inputs, enables bf16 activations from upstream).
    x = x_ref[...].astype(jnp.float32)
    z = z_ref[...].astype(jnp.float32)

    # Single fused MXU pass: [Linear1 | Linear2] share the same input z.
    h = (jnp.dot(z, wcat_ref[...], preferred_element_type=jnp.float32)
         + bcat_ref[...])                                   # (TB, 2*x_dim)

    # Static lane split of the fused projection.
    gate = jax.nn.sigmoid(h[:, :x_dim])   # sigmoid in (0,1): hard-sigmoid clamp is a no-op
    w = h[:, x_dim:]                                        # (TB, x_dim)

    gated = x * gate * w                                    # (TB, x_dim)

    # Row-wise reduce + ReLU, stored as a (TB, 1) column.  No XLU transpose;
    # the masked narrow store is negligible (output is <5% of HBM traffic).
    out_ref[...] = jnp.maximum(
        jnp.sum(gated, axis=1, keepdims=True), 0.0)         # (TB, 1)


def prepare_params(w1, b1, w2, b2):
    """One-time parameter prep (off the hot path).

    w1, w2: PyTorch-layout (x_dim, z_dim) = (out, in).  Returns the fused,
    pre-transposed matmul operand (z_dim, 2*x_dim) and fused bias (1, 2*x_dim).
    """
    wcat = jnp.concatenate([jnp.transpose(w1), jnp.transpose(w2)], axis=1)
    bcat = jnp.concatenate([b1, b2])[None, :]
    return wcat, bcat


def _pick_batch_tile(B):
    """Pick the batch tile (rows per grid step).

    - B <= 128: a single full block (block dim == full array dim is always
      legal, and splitting a tiny batch across cores buys nothing).
    - 128 < B <= 512: tb=128 so there are >= 2 grid steps (v7x second TC).
    - larger B: aim for >= 4 grid steps, 128-aligned, capped at 2048 so the
      lane-padded, double-buffered blocks (~3 KiB/row) stay ~6 MiB, well under
      v5e's 16 MiB scoped-VMEM default (and v6e/v7x's 32 MiB).
    """
    cap = 2048
    if B <= 128:
        return B
    if B <= 512:
        return 128
    tb = (B // 4) // 128 * 128
    return max(128, min(cap, tb))


def linear_model_forward(x, z, wcat, bcat):
    """x: (B, x_dim), z: (B, z_dim), wcat: (z_dim, 2*x_dim), bcat: (1, 2*x_dim)."""
    B, x_dim = x.shape
    _, z_dim = z.shape
    two_x = wcat.shape[1]

    tb = _pick_batch_tile(B)
    grid = (pl.cdiv(B, tb),)

    cost = pl.CostEstimate(
        flops=2 * B * z_dim * two_x + 5 * B * x_dim,
        transcendentals=B * x_dim,                       # sigmoid
        bytes_accessed=4 * (B * x_dim + B * z_dim + z_dim * two_x + two_x + B),
    )

    out = pl.pallas_call(
        linear_model_kernel,
        out_shape=jax.ShapeDtypeStruct((B, 1), jnp.float32),
        grid=grid,
        in_specs=[
            pl.BlockSpec((tb, x_dim), lambda i: (i, 0)),      # x  (batch-tiled)
            pl.BlockSpec((tb, z_dim), lambda i: (i, 0)),      # z  (batch-tiled)
            pl.BlockSpec((z_dim, two_x), lambda i: (0, 0)),   # fused [W1^T | W2^T], resident
            pl.BlockSpec((1, two_x), lambda i: (0, 0)),       # fused [b1 | b2], resident
        ],
        out_specs=pl.BlockSpec((tb, 1), lambda i: (i, 0)),    # per-row sums
        compiler_params=pltpu.CompilerParams(
            dimension_semantics=("parallel",)),
        cost_estimate=cost,
    )(x, z, wcat, bcat)
    return out[:, 0]


# jit the whole forward so the (tiny) surrounding glue fuses / constant-folds.
linear_model_forward_jit = jax.jit(linear_model_forward)


def linear_model_reference(x, z, w1, b1, w2, b2):
    mu = jax.nn.sigmoid(z @ w1.T + b1)
    gate = jnp.clip(mu, 0.0, 1.0)
    w = z @ w2.T + b2
    return jnp.maximum(jnp.sum(x * gate * w, axis=1), 0.0)


if __name__ == "__main__":
    x_dim, z_dim = 16, 8

    key = jax.random.PRNGKey(0)
    kx, kz, kw1, kb1, kw2, kb2 = jax.random.split(key, 6)

    # Deterministic parameter init (PyTorch Linear-style uniform bounds).
    bound = 1.0 / math.sqrt(z_dim)
    w1 = jax.random.uniform(kw1, (x_dim, z_dim), jnp.float32, -bound, bound)
    b1 = jax.random.uniform(kb1, (x_dim,), jnp.float32, -bound, bound)
    w2 = jax.random.uniform(kw2, (x_dim, z_dim), jnp.float32, -bound, bound)
    b2 = jax.random.uniform(kb2, (x_dim,), jnp.float32, -bound, bound)

    # One-time fusion/transposition of parameters (not on the per-call path).
    wcat, bcat = prepare_params(w1, b1, w2, b2)
    wcat, bcat = jax.block_until_ready((wcat, bcat))

    # Test 1: small batch consistent with the module (single full block).
    B1 = 8
    x1 = jax.random.normal(kx, (B1, x_dim), dtype=jnp.float32)
    z1 = jax.random.normal(kz, (B1, z_dim), dtype=jnp.float32)
    out1 = linear_model_forward_jit(x1, z1, wcat, bcat)
    jax.block_until_ready(out1)
    ref1 = linear_model_reference(x1, z1, w1, b1, w2, b2)
    assert out1.shape == (B1,)
    assert jnp.allclose(out1, ref1, atol=1e-5, rtol=1e-5)

    # Test 2: larger batch not divisible by 128 — exercises the cdiv grid with
    # a masked ragged last block and the multi-step "parallel" batch axis.
    B2 = 1000
    kx2, kz2 = jax.random.split(jax.random.PRNGKey(1), 2)
    x2 = jax.random.normal(kx2, (B2, x_dim), dtype=jnp.float32)
    z2 = jax.random.normal(kz2, (B2, z_dim), dtype=jnp.float32)
    out2 = linear_model_forward_jit(x2, z2, wcat, bcat)
    jax.block_until_ready(out2)
    ref2 = linear_model_reference(x2, z2, w1, b1, w2, b2)
    assert out2.shape == (B2,)
    assert jnp.allclose(out2, ref2, atol=1e-5, rtol=1e-5)

    print("KERNEL_OK")
</pallas_src>

<mosaic_0001>
module attributes {stable_mosaic.version = 11 : i64} {
  func.func @linear_model_kernel(%arg0: i32, %arg1: memref<8x16xf32, #tpu.memory_space<vmem>>, %arg2: memref<8x8xf32, #tpu.memory_space<vmem>>, %arg3: memref<8x32xf32, #tpu.memory_space<vmem>>, %arg4: memref<1x32xf32, #tpu.memory_space<vmem>>, %arg5: memref<8x1xf32, #tpu.memory_space<vmem>>) attributes {dimension_semantics = [#tpu.dimension_semantics<parallel>], iteration_bounds = array<i64: 1>, scalar_prefetch = 0 : i64, scratch_operands = 0 : i64, tpu.core_type = #tpu.core_type<tc>, window_params = [{transform_indices = @transform_0, window_bounds = array<i64: 8, 16>}, {transform_indices = @transform_1, window_bounds = array<i64: 8, 8>}, {pipeline_mode = #tpu.pipeline_mode<synchronous>, transform_indices = @transform_2, window_bounds = array<i64: 8, 32>}, {pipeline_mode = #tpu.pipeline_mode<synchronous>, transform_indices = @transform_3, window_bounds = array<i64: 1, 32>}, {transform_indices = @transform_4, window_bounds = array<i64: 8, 1>}]} {
    %c0 = arith.constant 0 : index
    %c0_0 = arith.constant 0 : index
    %0 = vector.load %arg1[%c0, %c0_0] : memref<8x16xf32, #tpu.memory_space<vmem>>, vector<8x16xf32>
    %c0_1 = arith.constant 0 : index
    %c0_2 = arith.constant 0 : index
    %1 = vector.load %arg2[%c0_1, %c0_2] : memref<8x8xf32, #tpu.memory_space<vmem>>, vector<8x8xf32>
    %c0_3 = arith.constant 0 : index
    %c0_4 = arith.constant 0 : index
    %2 = vector.load %arg3[%c0_3, %c0_4] : memref<8x32xf32, #tpu.memory_space<vmem>>, vector<8x32xf32>
    %cst = arith.constant dense<0.000000e+00> : vector<8x32xf32>
    %3 = tpu.matmul %1, %2, %cst {dimension_numbers = #tpu.dot_dimension_numbers<[1], [0], [0], [1], [0, 0, 1, 1], [], []>} : vector<8x8xf32>, vector<8x32xf32>, vector<8x32xf32> -> vector<8x32xf32>
    %c0_5 = arith.constant 0 : index
    %c0_6 = arith.constant 0 : index
    %4 = vector.load %arg4[%c0_5, %c0_6] : memref<1x32xf32, #tpu.memory_space<vmem>>, vector<1x32xf32>
    %5 = vector.broadcast %4 : vector<1x32xf32> to vector<8x32xf32>
    %6 = arith.addf %3, %5 : vector<8x32xf32>
    %7 = vector.extract_strided_slice %6 {offsets = [0, 0], sizes = [8, 16], strides = [1, 1]} : vector<8x32xf32> to vector<8x16xf32>
    %8 = arith.negf %7 : vector<8x16xf32>
    %9 = math.exp %8 : vector<8x16xf32>
    %cst_7 = arith.constant 1.000000e+00 : f32
    %10 = vector.broadcast %cst_7 : f32 to vector<8x16xf32>
    %11 = arith.addf %10, %9 : vector<8x16xf32>
    %12 = arith.divf %10, %11 : vector<8x16xf32>
    %13 = vector.extract_strided_slice %6 {offsets = [0, 16], sizes = [8, 16], strides = [1, 1]} : vector<8x32xf32> to vector<8x16xf32>
    %14 = arith.mulf %0, %12 : vector<8x16xf32>
    %15 = arith.mulf %14, %13 : vector<8x16xf32>
    %cst_8 = arith.constant dense<0.000000e+00> : vector<8xf32>
    %16 = vector.multi_reduction <add>, %15, %cst_8 [1] : vector<8x16xf32> to vector<8xf32>
    %17 = vector.shape_cast %16 : vector<8xf32> to vector<8x1xf32>
    %cst_9 = arith.constant 0.000000e+00 : f32
    %18 = vector.broadcast %cst_9 : f32 to vector<8x1xf32>
    %19 = arith.maximumf %17, %18 : vector<8x1xf32>
    %c0_10 = arith.constant 0 : index
    %c0_11 = arith.constant 0 : index
    %20 = vector.load %arg5[%c0_10, %c0_11] : memref<8x1xf32, #tpu.memory_space<vmem>>, vector<8x1xf32>
    tpu.vector_store %arg5[%c0_10, %c0_11], %19 {strides = array<i32>} : memref<8x1xf32, #tpu.memory_space<vmem>>, vector<8x1xf32>,
    return
  }
  func.func @transform_0(%arg0: i32) -> (i32, i32) {
    %c0_i32 = arith.constant 0 : i32
    %c0_i32_0 = arith.constant 0 : i32
    return %arg0, %c0_i32 : i32, i32
  }
  func.func @transform_1(%arg0: i32) -> (i32, i32) {
    %c0_i32 = arith.constant 0 : i32
    %c0_i32_0 = arith.constant 0 : i32
    return %arg0, %c0_i32 : i32, i32
  }
  func.func @transform_2(%arg0: i32) -> (i32, i32) {
    %c0_i32 = arith.constant 0 : i32
    %c0_i32_0 = arith.constant 0 : i32
    %c0_i32_1 = arith.constant 0 : i32
    return %c0_i32, %c0_i32_0 : i32, i32
  }
  func.func @transform_3(%arg0: i32) -> (i32, i32) {
    %c0_i32 = arith.constant 0 : i32
    %c0_i32_0 = arith.constant 0 : i32
    %c0_i32_1 = arith.constant 0 : i32
    return %c0_i32, %c0_i32_0 : i32, i32
  }
  func.func @transform_4(%arg0: i32) -> (i32, i32) {
    %c0_i32 = arith.constant 0 : i32
    %c0_i32_0 = arith.constant 0 : i32
    return %arg0, %c0_i32 : i32, i32
  }
}

</mosaic_0001>

<llo_original>
// kernel: linear_model_forward.1
$region0: #{linear_model_forward.1}
  #allocation0 [shape = 'u32[]', space=smem, size = 0x4, offset = 0x4, fixed_abs, tag = 'smem constant byte address 0x4 - core index']
  #allocation1 [shape = 'u32[144,128]{1,0:T(1,128)}', space=vmem, size = 0x12000, scoped, tag = 'internal scratch']
  %s0 = inlined_call_operand.hbm [shape: f32[8,16], index: 0, kind: input, shape index: {}]
  %s1 = inlined_call_operand.hbm [shape: f32[8,8], index: 1, kind: input, shape index: {}]
  %s2 = inlined_call_operand.hbm [shape: f32[8,32], index: 2, kind: input, shape index: {}]
  %s3 = inlined_call_operand.vmem [shape: f32[1,32], index: 3, kind: input, shape index: {}]
  %s4 = inlined_call_operand.vmem [shape: f32[8,1], index: 4, kind: output, shape index: {}]
  %s5 = sld [smem:[#allocation0]]
  $region38: #{linear_model_forward.1} parent=0
    _
  %s7 = ssub.s32 1, %s5
  %s8 = scalar_select 0, %s7, %s5
  $region1: #{linear_model_forward.1} parent=0
    #allocation2 [shape = 'u8[4096]{0}', space=vmem, size = 0x1000, scoped, tag = 'input window, operand 0, single buffered']
    #allocation3 [shape = 's32[1]{0}', space=sflag, size = 0x4, scoped, tag = 'scoped memory for linear_model_forward.1']
    #allocation4 [shape = 'u8[4096]{0}', space=vmem, size = 0x1000, scoped, tag = 'input window, operand 1, single buffered']
    #allocation5 [shape = 's32[1]{0}', space=sflag, size = 0x4, scoped, tag = 'scoped memory for linear_model_forward.1']
    #allocation6 [shape = 'u8[4096]{0}', space=vmem, size = 0x1000, scoped, tag = 'input window, operand 2, single buffered']
    %9 = vsyncpa [#allocation3], 0
    %10 = vsyncpa [#allocation5], 0
    // Predicated region
    $region2: #{linear_model_forward.1} parent=1 // pred_check
      _
    $region3: #{linear_model_forward.1} parent=1 // pred_check_branch
      %12 = sbr.rel (0) target = $region5
    $region4: #{linear_model_forward.1} parent=1 // pred_region
      %s14 = ssub.s32 128, 128
      %15 = vsyncadd [#allocation3], %s14
      %s17 = sshll.u32 [#allocation2], 4
      %s18 = int_to_ptr.vmem [resolvable:$true] %s17
      %20 = dma.hbm_to_vmem [thread:$0]  %s0, 128, %s18, [#allocation3]
    $region5: #{linear_model_forward.1} parent=1 // pred_fallthru
      _
    // Predicated region
    $region6: #{linear_model_forward.1} parent=1 // pred_check
      _
    $region7: #{linear_model_forward.1} parent=1 // pred_check_branch
      %22 = sbr.rel (0) target = $region9
    $region8: #{linear_model_forward.1} parent=1 // pred_region
      %s24 = ssub.s32 128, 128
      %25 = vsyncadd [#allocation5], %s24
      %s27 = sshll.u32 [#allocation4], 4
      %s28 = int_to_ptr.vmem [resolvable:$true] %s27
      %30 = dma.hbm_to_vmem [thread:$0]  %s1, 128, %s28, [#allocation5]
    $region9: #{linear_model_forward.1} parent=1 // pred_fallthru
      _
    // Predicated region
    $region10: #{linear_model_forward.1} parent=1 // pred_check
      _
    $region11: #{linear_model_forward.1} parent=1 // pred_check_branch
      %32 = sbr.rel (0) target = $region13
    $region12: #{linear_model_forward.1} parent=1 // pred_region
      %s34 = ssub.s32 128, 128
      %35 = vsyncadd [#allocation5], %s34
      %s37 = sshll.u32 [#allocation6], 4
      %s38 = int_to_ptr.vmem [resolvable:$true] %s37
      %40 = dma.hbm_to_vmem [thread:$0]  %s2, 128, %s38, [#allocation5]
    $region13: #{linear_model_forward.1} parent=1 // pred_fallthru
      _
    // Predicated region
    $region14: #{linear_model_forward.1} parent=1 // pred_check
      _
    $region15: #{linear_model_forward.1} parent=1 // pred_check_branch
      %42 = sbr.rel (0) target = $region17
    $region16: #{linear_model_forward.1} parent=1 // pred_region
      _
    $region17: #{linear_model_forward.1} parent=1 // pred_fallthru
      _
    // Predicated region
    $region18: #{linear_model_forward.1} parent=1 // pred_check
      _
    $region19: #{linear_model_forward.1} parent=1 // pred_check_branch
      %44 = sbr.rel (0) target = $region21
    $region20: #{linear_model_forward.1} parent=1 // pred_region
      %45 = dma.done [#allocation3], 128
    $region21: #{linear_model_forward.1} parent=1 // pred_fallthru
      _
    // Predicated region
    $region22: #{linear_model_forward.1} parent=1 // pred_check
      _
    $region23: #{linear_model_forward.1} parent=1 // pred_check_branch
      %47 = sbr.rel (0) target = $region25
    $region24: #{linear_model_forward.1} parent=1 // pred_region
      %48 = dma.done [#allocation5], 128
    $region25: #{linear_model_forward.1} parent=1 // pred_fallthru
      _
    // Predicated region
    $region26: #{linear_model_forward.1} parent=1 // pred_check
      _
    $region27: #{linear_model_forward.1} parent=1 // pred_check_branch
      %50 = sbr.rel (0) target = $region29
    $region28: #{linear_model_forward.1} parent=1 // pred_region
      %51 = dma.done [#allocation5], 128
    $region29: #{linear_model_forward.1} parent=1 // pred_fallthru
      _
    %v52 = vld [vmem:[#allocation2] sm:$0xff]
    %v53 = vld [vmem:[#allocation4] sm:$0xff]
    %v54 = vld [vmem:[#allocation6] sm:$0xff]
    %v55 = vld [vmem:[%s3] sm:$0x1]
    %v57 = vlaneseq
    %v58 = vshrl.u32 %v57, 7
    %v59 = vsub.s32 0, %v58
    %v60 = vrot.slane %v55, %v59
    %vm62 = vcmask 64512
    %v64 = vsel %vm62, %v53, 0
    %66 = vmatprep.subr.mxu0 0.0
    %67 = vmatpush1.msra.mxu0 %v54
    %68 = vmatprep.subr.mxu0 0.0
    %69 = vmatpush1.msra.mxu0 0.0
    %70 = vmatprep.subr.mxu0 0.0
    %71 = vmatpush1.msra.mxu0 0.0
    %72 = vmatprep.subr.mxu0 0.0
    %73 = vmatpush1.msra.mxu0 0.0
    %74 = vmatprep.subr.mxu0 0.0
    %75 = vmatpush1.msra.mxu0 0.0
    %76 = vmatprep.subr.mxu0 0.0
    %77 = vmatpush1.msra.mxu0 0.0
    %78 = vmatprep.subr.mxu0 0.0
    %79 = vmatpush1.msra.mxu0 0.0
    %80 = vmatprep.subr.mxu0 0.0
    %81 = vmatpush1.msra.mxu0 0.0
    %82 = vmatprep.subr.mxu0 0.0
    %83 = vmatpush1.msra.mxu0 0.0
    %84 = vmatprep.subr.mxu0 0.0
    %85 = vmatpush1.msra.mxu0 0.0
    %86 = vmatprep.subr.mxu0 0.0
    %87 = vmatpush1.msra.mxu0 0.0
    %88 = vmatprep.subr.mxu0 0.0
    %89 = vmatpush1.msra.mxu0 0.0
    %90 = vmatprep.subr.mxu0 0.0
    %91 = vmatpush1.msra.mxu0 0.0
    %92 = vmatprep.subr.mxu0 0.0
    %93 = vmatpush1.msra.mxu0 0.0
    %94 = vmatprep.subr.mxu0 0.0
    %95 = vmatpush1.msra.mxu0 0.0
    %96 = vmatprep.subr.mxu0 0.0
    %97 = vmatpush1.msra.mxu0 0.0
    %98 = vmatprep.subr.mxu0 0.0
    %99 = vmatpush1.msra.mxu0 0.0
    %100 = vmatprep.subr.mxu0 0.0
    %101 = vmatpush1.msra.mxu0 0.0
    %102 = vmatprep.subr.mxu0 0.0
    %103 = vmatpush1.msra.mxu0 0.0
    %104 = vmatprep.subr.mxu0 0.0
    %105 = vmatpush1.msra.mxu0 0.0
    %106 = vmatprep.subr.mxu0 0.0
    %107 = vmatpush1.msra.mxu0 0.0
    %108 = vmatprep.subr.mxu0 0.0
    %109 = vmatpush1.msra.mxu0 0.0
    %110 = vmatprep.subr.mxu0 0.0
    %111 = vmatpush1.msra.mxu0 0.0
    %112 = vmatprep.subr.mxu0 0.0
    %113 = vmatpush1.msra.mxu0 0.0
    %114 = vmatprep.subr.mxu0 0.0
    %115 = vmatpush1.msra.mxu0 0.0
    %116 = vmatprep.subr.mxu0 0.0
    %117 = vmatpush1.msra.mxu0 0.0
    %118 = vmatprep.subr.mxu0 0.0
    %119 = vmatpush1.msra.mxu0 0.0
    %120 = vmatprep.subr.mxu0 0.0
    %121 = vmatpush1.msra.mxu0 0.0
    %122 = vmatprep.subr.mxu0 0.0
    %123 = vmatpush1.msra.mxu0 0.0
    %124 = vmatprep.subr.mxu0 0.0
    %125 = vmatpush1.msra.mxu0 0.0
    %126 = vmatprep.subr.mxu0 0.0
    %127 = vmatpush1.msra.mxu0 0.0
    %128 = vmatprep.subr.mxu0 0.0
    %129 = vmatpush1.msra.mxu0 0.0
    %130 = vmatprep.mubr.f32.mxu0 0.0
    %131 = vmatmul.mubr.f32.gmra.mrb[0].mxu0 %v64
    %v132 = vpop.f32.mrb[0].mxu0
    %v133 = vadd.f32 %v60, %v132
    %v134 = vpop.f32.mrb[0].mxu0
    %135 = vdwg.mxu0
    %v136 = vxor.u32 %v133, 2147483648
    %v137 = vmul.f32 %v136, 1.442695
    %v138 = vpow.pop %v137
    %v139 = vadd.f32 %v138, 1.0
    %v140 = vrcp.pop %v139
    %v141 = vmul.f32 1.0, %v140
    %v142 = vmul.f32 %v52, %v141
    %144 = vrot.lane.b32.xlu0 %v133, 112
    %v145 = vpop.permute.xlu0 %144
    %v147 = vmul.f32 %v142, %v145
    %vm148 = vcmask 130048
    %v149 = vsel %vm148, %v147, 0.0
    %150 = vadd.xlane.f32.xlu0 %v149
    %v151 = vpop.xlane.xlu0 %150
    %v152 = vmax.f32 %v151, 0.0
    %vm153 = vcmask 7168
    %154 = vst.msk [vmem:[%s4] sm:$0xff] %vm153, %v152
    // Predicated region
    $region30: #{linear_model_forward.1} parent=1 // pred_check
      _
    $region31: #{linear_model_forward.1} parent=1 // pred_check_branch
      %156 = sbr.rel (0) target = $region33
    $region32: #{linear_model_forward.1} parent=1 // pred_region
      _
    $region33: #{linear_model_forward.1} parent=1 // pred_fallthru
      _
    // Predicated region
    $region34: #{linear_model_forward.1} parent=1 // pred_check
      _
    $region35: #{linear_model_forward.1} parent=1 // pred_check_branch
      %158 = sbr.rel (0) target = $region37
    $region36: #{linear_model_forward.1} parent=1 // pred_region
      _
    $region37: #{linear_model_forward.1} parent=1 // pred_fallthru
      _
    %159 = vsyncpa [#allocation3], 1
    %160 = vsyncpa [#allocation5], 1

</llo_original>
